<compile_context>
chip_gen: v5e
topology: v5e:2x2
jax: 0.10.0
libtpu: 0.0.40
codegen_flags: <defaults>
</compile_context>

<pallas_src>
import jax
import jax.numpy as jnp
from jax.experimental import pallas as pl
from jax.experimental.pallas import tpu as pltpu

INPUT_SIZE = 784
NUM_CLASSES = 10
N_PAD = 128              # lane-dense padded output width
DEFAULT_TM = 512         # batch tile (rows): roofline-saturating, pipeline-friendly
MIN_GRID_STEPS = 4       # keep the pipeline (and v7x's 2 TCs) fed
SMALL_BATCH_CUTOFF = 256 # below this, a fused XLA dot beats a standalone kernel


def _round_up(n, m):
    return ((n + m - 1) // m) * m


def prepare_params(w_t, b, dtype=jnp.float32):
    """One-time parameter prep (call once, reuse across forward calls).

    w_t: [INPUT_SIZE, NUM_CLASSES]  (transpose of PyTorch fc1.weight)
    b:   [NUM_CLASSES]
    Returns (w_p, b_p) zero-padded on the class axis 10 -> 128 so output
    stores are lane-dense. Pass the same dtype as your activations x.
    """
    w_p = jnp.pad(w_t.astype(dtype), ((0, 0), (0, N_PAD - NUM_CLASSES)))
    b_p = jnp.pad(b.reshape(1, NUM_CLASSES).astype(jnp.float32),
                  ((0, 0), (0, N_PAD - NUM_CLASSES)))
    return w_p, b_p


def _linear_kernel(x_ref, w_ref, b_ref, o_ref):
    # One batch tile per grid step: MXU matmul with f32 accumulation,
    # f32 bias add on the VPU, lane-dense (tm, 128) store.
    acc = jnp.dot(x_ref[...], w_ref[...], preferred_element_type=jnp.float32)
    o_ref[...] = (acc + b_ref[...]).astype(o_ref.dtype)


def _pick_tm(B, max_tile_rows, min_grid_steps):
    # Adaptive tile: at least `min_grid_steps` grid steps, capped at
    # max_tile_rows, sublane (8) aligned -> the partial tail block wastes at
    # most 7 rows instead of up to a whole tile.
    n_tiles = max(min_grid_steps, pl.cdiv(B, max_tile_rows))
    tm = _round_up(pl.cdiv(B, n_tiles), 8)
    return max(8, min(tm, max_tile_rows))


def net1_forward(x, w_p, b_p, *, max_tile_rows=DEFAULT_TM):
    """Net1 forward: returns x @ W^T + b, shape [B, NUM_CLASSES].

    x:   [B, INPUT_SIZE]  (f32, or bf16 if it already lives in bf16 upstream)
    w_p: [INPUT_SIZE, N_PAD]  from prepare_params (same dtype as x)
    b_p: [1, N_PAD] f32       from prepare_params
    """
    B = x.shape[0]
    assert x.shape[1] == INPUT_SIZE
    assert w_p.shape == (INPUT_SIZE, N_PAD)
    assert b_p.shape == (1, N_PAD)

    # Tiny batches: standalone kernel is pure grid/DMA-issue overhead; let XLA
    # fuse a plain dot instead.
    if B < SMALL_BATCH_CUTOFF:
        out = jnp.dot(x, w_p[:, :NUM_CLASSES],
                      preferred_element_type=jnp.float32)
        return out + b_p[0, :NUM_CLASSES]

    tm = _pick_tm(B, max_tile_rows, MIN_GRID_STEPS)
    grid = (pl.cdiv(B, tm),)

    itemsize = jnp.dtype(x.dtype).itemsize
    bytes_accessed = (B * INPUT_SIZE * itemsize            # x read
                      + INPUT_SIZE * N_PAD * jnp.dtype(w_p.dtype).itemsize
                      + N_PAD * 4                          # bias
                      + B * N_PAD * 4)                     # output write

    out = pl.pallas_call(
        _linear_kernel,
        out_shape=jax.ShapeDtypeStruct((B, N_PAD), jnp.float32),
        grid_spec=pltpu.PrefetchScalarGridSpec(
            num_scalar_prefetch=0,
            grid=grid,
            in_specs=[
                # x: walks the batch axis, one (tm, 784) tile per step.
                # Last block may be partial: OOB reads are garbage, but the
                # matching output rows don't exist so writes are masked.
                pl.BlockSpec((tm, INPUT_SIZE), lambda i: (i, 0)),
                # W, b: constant index_map -> stay VMEM resident across steps.
                pl.BlockSpec((INPUT_SIZE, N_PAD), lambda i: (0, 0)),
                pl.BlockSpec((1, N_PAD), lambda i: (0, 0)),
            ],
            out_specs=pl.BlockSpec((tm, N_PAD), lambda i: (i, 0)),
        ),
        compiler_params=pltpu.CompilerParams(
            # Independent batch tiles: shard across v7x's 2 TensorCores.
            dimension_semantics=("parallel",),
            # Explicit scoped-VMEM budget; working set at tm=512 is ~4.5 MiB
            # double-buffered, comfortably inside 32 MiB on every generation.
            vmem_limit_bytes=32 * 1024 * 1024,
        ),
        cost_estimate=pl.CostEstimate(
            flops=2 * B * INPUT_SIZE * N_PAD,
            transcendentals=0,
            bytes_accessed=int(bytes_accessed),
        ),
    )(x, w_p, b_p)

    # Drop the zero-padded logit columns (cols 10..127 are 0.0, not -inf, so
    # they must never be consumed directly).
    return out[:, :NUM_CLASSES]


def init_params(key):
    # Deterministic synthetic init mimicking nn.Linear's default bounds:
    # U(-1/sqrt(fan_in), 1/sqrt(fan_in)) for weight and bias.
    kw, kb = jax.random.split(key)
    bound = 1.0 / jnp.sqrt(jnp.float32(INPUT_SIZE))
    w = jax.random.uniform(kw, (NUM_CLASSES, INPUT_SIZE), jnp.float32,
                           minval=-bound, maxval=bound)
    b = jax.random.uniform(kb, (NUM_CLASSES,), jnp.float32,
                           minval=-bound, maxval=bound)
    return jnp.transpose(w), b   # w_t: [INPUT_SIZE, NUM_CLASSES], b: [NUM_CLASSES]


if __name__ == "__main__":
    key = jax.random.PRNGKey(0)
    k_params, k_x1, k_x2 = jax.random.split(key, 3)

    w_t, b = init_params(k_params)
    # One-time param prep (hoisted out of the per-call forward).
    w_p, b_p = prepare_params(w_t, b)

    # Small batch: exercises the XLA short-circuit path.
    batch = 8
    x = jax.random.normal(k_x1, (batch, INPUT_SIZE), jnp.float32)
    out = jax.block_until_ready(net1_forward(x, w_p, b_p))
    ref = x @ w_t + b.reshape(1, NUM_CLASSES)
    assert out.shape == (batch, NUM_CLASSES)
    assert jnp.allclose(out, ref, atol=1e-4, rtol=1e-4)

    # Larger batch, NOT a multiple of the tile: exercises the Pallas kernel
    # with an adaptive tile (tm=136, grid=4) and a masked partial tail block.
    batch2 = 520
    x2 = jax.random.normal(k_x2, (batch2, INPUT_SIZE), jnp.float32)
    out2 = jax.block_until_ready(net1_forward(x2, w_p, b_p))
    ref2 = x2 @ w_t + b.reshape(1, NUM_CLASSES)
    assert out2.shape == (batch2, NUM_CLASSES)
    assert jnp.allclose(out2, ref2, atol=1e-4, rtol=1e-4)

    print("KERNEL_OK")
</pallas_src>

<mosaic_0001>
module attributes {stable_mosaic.version = 11 : i64} {
  func.func @_linear_kernel(%arg0: i32, %arg1: memref<136x784xf32, #tpu.memory_space<vmem>>, %arg2: memref<784x128xf32, #tpu.memory_space<vmem>>, %arg3: memref<1x128xf32, #tpu.memory_space<vmem>>, %arg4: memref<136x128xf32, #tpu.memory_space<vmem>>) attributes {dimension_semantics = [#tpu.dimension_semantics<parallel>], iteration_bounds = array<i64: 4>, scalar_prefetch = 0 : i64, scratch_operands = 0 : i64, tpu.core_type = #tpu.core_type<tc>, window_params = [{transform_indices = @transform_0, window_bounds = array<i64: 136, 784>}, {pipeline_mode = #tpu.pipeline_mode<synchronous>, transform_indices = @transform_1, window_bounds = array<i64: 784, 128>}, {pipeline_mode = #tpu.pipeline_mode<synchronous>, transform_indices = @transform_2, window_bounds = array<i64: 1, 128>}, {transform_indices = @transform_3, window_bounds = array<i64: 136, 128>}]} {
    %c0 = arith.constant 0 : index
    %c0_0 = arith.constant 0 : index
    %0 = vector.load %arg1[%c0, %c0_0] : memref<136x784xf32, #tpu.memory_space<vmem>>, vector<136x784xf32>
    %c0_1 = arith.constant 0 : index
    %c0_2 = arith.constant 0 : index
    %1 = vector.load %arg2[%c0_1, %c0_2] : memref<784x128xf32, #tpu.memory_space<vmem>>, vector<784x128xf32>
    %cst = arith.constant dense<0.000000e+00> : vector<136x128xf32>
    %2 = tpu.matmul %0, %1, %cst {dimension_numbers = #tpu.dot_dimension_numbers<[1], [0], [0], [1], [0, 0, 1, 1], [], []>} : vector<136x784xf32>, vector<784x128xf32>, vector<136x128xf32> -> vector<136x128xf32>
    %c0_3 = arith.constant 0 : index
    %c0_4 = arith.constant 0 : index
    %3 = vector.load %arg3[%c0_3, %c0_4] : memref<1x128xf32, #tpu.memory_space<vmem>>, vector<1x128xf32>
    %4 = vector.broadcast %3 : vector<1x128xf32> to vector<136x128xf32>
    %5 = arith.addf %2, %4 : vector<136x128xf32>
    %c0_5 = arith.constant 0 : index
    %c0_6 = arith.constant 0 : index
    %6 = vector.load %arg4[%c0_5, %c0_6] : memref<136x128xf32, #tpu.memory_space<vmem>>, vector<136x128xf32>
    tpu.vector_store %arg4[%c0_5, %c0_6], %5 {strides = array<i32>} : memref<136x128xf32, #tpu.memory_space<vmem>>, vector<136x128xf32>,
    return
  }
  func.func @transform_0(%arg0: i32) -> (i32, i32) {
    %c0_i32 = arith.constant 0 : i32
    %c0_i32_0 = arith.constant 0 : i32
    return %arg0, %c0_i32 : i32, i32
  }
  func.func @transform_1(%arg0: i32) -> (i32, i32) {
    %c0_i32 = arith.constant 0 : i32
    %c0_i32_0 = arith.constant 0 : i32
    %c0_i32_1 = arith.constant 0 : i32
    return %c0_i32, %c0_i32_0 : i32, i32
  }
  func.func @transform_2(%arg0: i32) -> (i32, i32) {
    %c0_i32 = arith.constant 0 : i32
    %c0_i32_0 = arith.constant 0 : i32
    %c0_i32_1 = arith.constant 0 : i32
    return %c0_i32, %c0_i32_0 : i32, i32
  }
  func.func @transform_3(%arg0: i32) -> (i32, i32) {
    %c0_i32 = arith.constant 0 : i32
    %c0_i32_0 = arith.constant 0 : i32
    return %arg0, %c0_i32 : i32, i32
  }
}

</mosaic_0001>

<llo_original>
// kernel: tpu_custom_call.1
$region0: #{tpu_custom_call.1}
  #allocation0 [shape = 'u32[]', space=smem, size = 0x4, offset = 0x4, fixed_abs, tag = 'smem constant byte address 0x4 - core index']
  #allocation1 [shape = 'u32[72,128]{1,0:T(1,128)}', space=vmem, size = 0x9000, scoped, tag = 'internal scratch']
  %s0 = inlined_call_operand.hbm [shape: f32[520,784], index: 0, kind: input, shape index: {}]
  %s1 = inlined_call_operand.hbm [shape: f32[784,128], index: 1, kind: input, shape index: {}]
  %s2 = inlined_call_operand.hbm [shape: f32[1,128], index: 2, kind: input, shape index: {}]
  %s3 = inlined_call_operand.hbm [shape: f32[520,128], index: 3, kind: output, shape index: {}]
  %s4 = sld [smem:[#allocation0]]
  $region57: #{tpu_custom_call.1} parent=0
    _
  %s6 = ssub.s32 1, %s4
  %s7 = scalar_select 0, %s6, %s4
  $region1: #{tpu_custom_call.1} parent=0
    #allocation2 [shape = 'u8[974848]{0}', space=vmem, size = 0xee000, scoped, tag = 'input window, operand 0']
    #allocation3 [shape = 's32[2]{0}', space=sflag, size = 0x8, scoped, tag = 'scoped memory for tpu_custom_call.1']
    #allocation4 [shape = 's32[2]{0}', space=sflag, size = 0x8, scoped, tag = 'scoped memory for tpu_custom_call.1']
    #allocation5 [shape = 'u8[401408]{0}', space=vmem, size = 0x62000, scoped, tag = 'input window, operand 1, single buffered']
    #allocation6 [shape = 's32[1]{0}', space=sflag, size = 0x4, scoped, tag = 'scoped memory for tpu_custom_call.1']
    #allocation7 [shape = 'u8[512]{0}', space=vmem, size = 0x400, scoped, tag = 'input window, operand 2, single buffered']
    #allocation8 [shape = 'u8[139264]{0}', space=vmem, size = 0x22000, scoped, tag = 'output window, operand 0']
    %8 = vsyncpa [#allocation3], 0
    %s9 = scalar_lea.sflag [#allocation3], 1
    %10 = vsyncpa %s9, 0
    %11 = vsyncpa [#allocation6], 0
    %12 = vsyncpa [#allocation4], 0
    %s13 = scalar_lea.sflag [#allocation4], 1
    %14 = vsyncpa %s13, 0
    loop: start=0, step=1, limit=6
    $region2: #{tpu_custom_call.1} parent=1 // loop_pre_header
      _
    $region3: #{tpu_custom_call.1} parent=1 // loop_header
      %s16 = sphi 0, %s20
      %p17 = scmp.ge.s32.totalorder %s16, 6
      %s26 = sphi 0, %s28
      %s29 = sphi 0, %s26
      %s30 = sphi 0, %s29
      %s46 = sphi 0, %s30
      %s50 = sphi 0, %s50
      %s52 = sphi 0, %s50
      %s53 = sphi 0, %s52
      %s67 = sphi 0, %s53
      %s71 = sphi 0, %s71
      %s73 = sphi 0, %s71
      %s74 = sphi 0, %s73
      %s88 = sphi 0, %s74
      %s94 = sphi 0, %s96
      %s97 = sphi 0, %s94
      %s98 = sphi 0, %s97
      %s114 = sphi 0, %s98
    $region4: #{tpu_custom_call.1} parent=1 // loop_header_branch
      %19 = sbr.rel (%p17) target = $region8
    $region5: #{tpu_custom_call.1} parent=1 // loop_body
      %s21 = ssub.s32 %s16, 1
      %s22 = ssub.s32 %s16, 2
      %s23 = sadd.s32 %s16, 1
      %s24 = ssub.s32 %s16, %s23
      %p25 = scmp.eq.s32.totalorder %s24, 0
      %s27 = sadd.s32 %s26, 1
      %s28 = scalar_select %p25, %s26, %s27
      %p31 = pneg %p25
      %p32 = scmp.eq.s32.totalorder %s16, 3
      %p33 = por %p31, %p32
      %p34 = scmp.ne.s32.totalorder %s26, %s29
      %p35 = scmp.eq.s32.totalorder %s16, 0
      %p36 = por %p34, %p35
      %p37 = scmp.ne.s32.totalorder %s26, %s29
      %p38 = scmp.eq.s32.totalorder %s21, 3
      %p39 = por %p37, %p38
      %p40 = scmp.ne.s32.totalorder %s29, %s30
      %p41 = scmp.eq.s32.totalorder %s21, 0
      %p42 = por %p40, %p41
      %p43 = scmp.ne.s32.totalorder %s29, %s30
      %p44 = scmp.eq.s32.totalorder %s22, 3
      %p45 = por %p43, %p44
      %p47 = scmp.ne.s32.totalorder %s30, %s46
      %p48 = scmp.eq.s32.totalorder %s22, 0
      %p49 = por %p47, %p48
      %s51 = sadd.s32 %s50, 1
      %p54 = scmp.eq.s32.totalorder %s16, 3
      %p55 = scmp.ne.s32.totalorder %s50, %s52
      %p56 = scmp.eq.s32.totalorder %s16, 0
      %p57 = por %p55, %p56
      %p58 = scmp.ne.s32.totalorder %s50, %s52
      %p59 = scmp.eq.s32.totalorder %s21, 3
      %p60 = por %p58, %p59
      %p61 = scmp.ne.s32.totalorder %s52, %s53
      %p62 = scmp.eq.s32.totalorder %s21, 0
      %p63 = por %p61, %p62
      %p64 = scmp.ne.s32.totalorder %s52, %s53
      %p65 = scmp.eq.s32.totalorder %s22, 3
      %p66 = por %p64, %p65
      %p68 = scmp.ne.s32.totalorder %s53, %s67
      %p69 = scmp.eq.s32.totalorder %s22, 0
      %p70 = por %p68, %p69
      %s72 = sadd.s32 %s71, 1
      %p75 = scmp.eq.s32.totalorder %s16, 3
      %p76 = scmp.ne.s32.totalorder %s71, %s73
      %p77 = scmp.eq.s32.totalorder %s16, 0
      %p78 = por %p76, %p77
      %p79 = scmp.ne.s32.totalorder %s71, %s73
      %p80 = scmp.eq.s32.totalorder %s21, 3
      %p81 = por %p79, %p80
      %p82 = scmp.ne.s32.totalorder %s73, %s74
      %p83 = scmp.eq.s32.totalorder %s21, 0
      %p84 = por %p82, %p83
      %p85 = scmp.ne.s32.totalorder %s73, %s74
      %p86 = scmp.eq.s32.totalorder %s22, 3
      %p87 = por %p85, %p86
      %p89 = scmp.ne.s32.totalorder %s74, %s88
      %p90 = scmp.eq.s32.totalorder %s22, 0
      %p91 = por %p89, %p90
      %s92 = ssub.s32 %s16, %s23
      %p93 = scmp.eq.s32.totalorder %s92, 0
      %s95 = sadd.s32 %s94, 1
      %s96 = scalar_select %p93, %s94, %s95
      %p99 = pneg %p93
      %p100 = scmp.eq.s32.totalorder %s16, 3
      %p101 = por %p99, %p100
      %p102 = scmp.ne.s32.totalorder %s94, %s97
      %p103 = scmp.eq.s32.totalorder %s16, 0
      %p104 = por %p102, %p103
      %p105 = scmp.ne.s32.totalorder %s94, %s97
      %p106 = scmp.eq.s32.totalorder %s21, 3
      %p107 = por %p105, %p106
      %p108 = scmp.ne.s32.totalorder %s97, %s98
      %p109 = scmp.eq.s32.totalorder %s21, 0
      %p110 = por %p108, %p109
      %p111 = scmp.ne.s32.totalorder %s97, %s98
      %p112 = scmp.eq.s32.totalorder %s22, 3
      %p113 = por %p111, %p112
      %p115 = scmp.ne.s32.totalorder %s98, %s114
      %p116 = scmp.eq.s32.totalorder %s22, 0
      %p117 = por %p115, %p116
      %p118 = scmp.le.s32.totalorder 1, %s16
      %p119 = scmp.lt.s32.totalorder %s16, 5
      %p120 = pnand %p118, %p119
      %p121 = pneg %p120
      // Predicated region
      $region9: #{tpu_custom_call.1} parent=5 // pred_check
        _
      $region10: #{tpu_custom_call.1} parent=5 // pred_check_branch
        %123 = sbr.rel (%p120) target = $region12
      $region11: #{tpu_custom_call.1} parent=5 // pred_region
        %s124 = ssub.s32 %s16, 1
        // Predicated region
        $region13: #{tpu_custom_call.1} parent=11 // pred_check
          %p125 = pneg %p63
        $region14: #{tpu_custom_call.1} parent=11 // pred_check_branch
          %127 = sbr.rel (%p125) target = $region16
        $region15: #{tpu_custom_call.1} parent=11 // pred_region
          %129 = vsyncadd [#allocation6], 0
          %s130 = sshll.u32 %s1, 4
          %s131 = int_to_ptr.hbm [resolvable:$true] %s130
          %s132 = sshll.u32 [#allocation5], 4
          %s133 = int_to_ptr.vmem [resolvable:$true] %s132
          %138 = dma.hbm_to_vmem [thread:$0]  %s131, 12544, %s133, [#allocation6], 128, 128, 8
        $region16: #{tpu_custom_call.1} parent=11 // pred_fallthru
          _
        // Predicated region
        $region17: #{tpu_custom_call.1} parent=11 // pred_check
          %p139 = pneg %p84
        $region18: #{tpu_custom_call.1} parent=11 // pred_check_branch
          %141 = sbr.rel (%p139) target = $region20
        $region19: #{tpu_custom_call.1} parent=11 // pred_region
          %143 = vsyncadd [#allocation6], 0
          %s145 = sshll.u32 %s2, 4
          %s146 = int_to_ptr.hbm [resolvable:$true] %s145
          %s147 = sshll.u32 [#allocation7], 4
          %s148 = int_to_ptr.vmem [resolvable:$true] %s147
          %150 = dma.hbm_to_vmem [thread:$0]  %s146, 16, %s148, [#allocation6]
        $region20: #{tpu_custom_call.1} parent=11 // pred_fallthru
          _
      $region12: #{tpu_custom_call.1} parent=5 // pred_fallthru
        _
      %p151 = scmp.lt.s32.totalorder %s16, 4
      // Predicated region
      $region21: #{tpu_custom_call.1} parent=5 // pred_check
        %p152 = pneg %p151
      $region22: #{tpu_custom_call.1} parent=5 // pred_check_branch
        %154 = sbr.rel (%p152) target = $region24
      $region23: #{tpu_custom_call.1} parent=5 // pred_region
        // Predicated region
        $region25: #{tpu_custom_call.1} parent=23 // pred_check
          %p155 = pneg %p36
        $region26: #{tpu_custom_call.1} parent=23 // pred_check_branch
          %157 = sbr.rel (%p155) target = $region28
        $region27: #{tpu_custom_call.1} parent=23 // pred_region
          %s158 = sand.u32 %s26, 1
          %s159 = scalar_lea.sflag [#allocation3], %s158
          %s160 = sand.u32 %s26, 1
          %s161 = smul.addr %s160, 952
          %s162 = scalar_lea.vmem [#allocation2], %s161
          %s163 = smul.u32 17, %s16
          %s164 = ssub.s32 65, %s163
          %p165 = scmp.lt.s32.totalorder %s164, 17
          %s166 = scalar_select %p165, %s164, 17
          %s167 = smul.u32 8, %s166
          %s168 = smul.u32 %s167, 7
          %s169 = ssub.s32 952, %s168
          %s170 = sshll.u32 %s169, 4
          %171 = vsyncadd %s159, %s170
          %p172 = scmp.ne.s32.totalorder 0, %s168
          %s173 = smul.addr %s163, 7
          %s174 = smul.addr %s173, 8
          %s175 = scalar_lea.hbm %s0, %s174
          %s176 = smul.u32 56, %s166
          %s177 = sshll.u32 %s175, 4
          %s178 = int_to_ptr.hbm [resolvable:$true] %s177
          %s179 = sshll.u32 %s162, 4
          %s180 = int_to_ptr.vmem [resolvable:$true] %s179
          %s181 = sshll.u32 %s176, 4
          %185 = dma.hbm_to_vmem [thread:$0]  (%p172), %s178, %s181, %s180, %s159, 896, 896, 56
        $region28: #{tpu_custom_call.1} parent=23 // pred_fallthru
          _
      $region24: #{tpu_custom_call.1} parent=5 // pred_fallthru
        _
      %p186 = scmp.le.s32.totalorder 1, %s16
      %p187 = scmp.lt.s32.totalorder %s16, 5
      %p188 = pnand %p186, %p187
      %p189 = pneg %p188
      // Predicated region
      $region29: #{tpu_custom_call.1} parent=5 // pred_check
        _
      $region30: #{tpu_custom_call.1} parent=5 // pred_check_branch
        %191 = sbr.rel (%p188) target = $region32
      $region31: #{tpu_custom_call.1} parent=5 // pred_region
        %s192 = ssub.s32 %s16, 1
        %s193 = sand.u32 %s29, 1
        %s194 = scalar_lea.sflag [#allocation3], %s193
        %s195 = sand.u32 %s29, 1
        %s196 = smul.addr %s195, 952
        %s197 = scalar_lea.vmem [#allocation2], %s196
        // Predicated region
        $region33: #{tpu_custom_call.1} parent=31 // pred_check
          %p198 = pneg %p42
        $region34: #{tpu_custom_call.1} parent=31 // pred_check_branch
          %200 = sbr.rel (%p198) target = $region36
        $region35: #{tpu_custom_call.1} parent=31 // pred_region
          %202 = dma.done %s194, 15232
        $region36: #{tpu_custom_call.1} parent=31 // pred_fallthru
          _
        // Predicated region
        $region37: #{tpu_custom_call.1} parent=31 // pred_check
          %p203 = pneg %p63
        $region38: #{tpu_custom_call.1} parent=31 // pred_check_branch
          %205 = sbr.rel (%p203) target = $region40
        $region39: #{tpu_custom_call.1} parent=31 // pred_region
          %207 = dma.done [#allocation6], 12544
        $region40: #{tpu_custom_call.1} parent=31 // pred_fallthru
          _
        // Predicated region
        $region41: #{tpu_custom_call.1} parent=31 // pred_check
          %p208 = pneg %p84
        $region42: #{tpu_custom_call.1} parent=31 // pred_check_branch
          %210 = sbr.rel (%p208) target = $region44
        $region43: #{tpu_custom_call.1} parent=31 // pred_region
          %212 = dma.done [#allocation6], 16
        $region44: #{tpu_custom_call.1} parent=31 // pred_fallthru
          _
        %s213 = sand.u32 %s29, 1
        %s214 = scalar_lea.sflag [#allocation3], %s213
        %s215 = sand.u32 %s29, 1
        %s216 = smul.addr %s215, 952
        %s217 = scalar_lea.vmem [#allocation2], %s216
        %p218 = pneg %p42
        %p219 = pneg %p39
        %p220 = pneg %p63
        %p221 = pneg %p60
        %p222 = pneg %p84
        %p223 = pneg %p81
        %p224 = pneg %p110
        %p225 = pneg %p107
        %s226 = sand.u32 %s97, 1
        %s227 = scalar_lea.sflag [#allocation4], %s226
        %s228 = sand.u32 %s97, 1
        %s229 = smul.addr %s228, 136
        %s230 = scalar_lea.vmem [#allocation8], %s229
        %s231 = smul.u32 17, %s21
        %s232 = ssub.s32 65, %s231
        %p233 = scmp.lt.s32.totalorder %s232, 17
        %s234 = scalar_select %p233, %s232, 17
        %s235 = smul.u32 8, %s234
        %s236 = smul.u32 %s235, 7
        %s237 = smul.u32 17, %s21
        %s238 = ssub.s32 65, %s237
        %p239 = scmp.lt.s32.totalorder %s238, 17
        %s240 = scalar_select %p239, %s238, 17
        %s241 = smul.u32 8, %s240
        %v242 = vld [vmem:[%s197] sm:$0xff]
        %v243 = vld [vmem:[%s197 + $0x8] sm:$0xff]
        %v244 = vld [vmem:[%s197 + $0x10] sm:$0xff]
        %v245 = vld [vmem:[%s197 + $0x18] sm:$0xff]
        %v246 = vld [vmem:[%s197 + $0x20] sm:$0xff]
        %v247 = vld [vmem:[%s197 + $0x28] sm:$0xff]
        %v248 = vld [vmem:[%s197 + $0x30] sm:$0xff]
        %v249 = vld [vmem:[%s197 + $0x38] sm:$0xff]
        %v250 = vld [vmem:[%s197 + $0x40] sm:$0xff]
        %v251 = vld [vmem:[%s197 + $0x48] sm:$0xff]
        %v252 = vld [vmem:[%s197 + $0x50] sm:$0xff]
        %v253 = vld [vmem:[%s197 + $0x58] sm:$0xff]
        %v254 = vld [vmem:[%s197 + $0x60] sm:$0xff]
        %v255 = vld [vmem:[%s197 + $0x68] sm:$0xff]
        %v256 = vld [vmem:[%s197 + $0x70] sm:$0xff]
        %v257 = vld [vmem:[%s197 + $0x78] sm:$0xff]
        %v258 = vld [vmem:[%s197 + $0x80] sm:$0xff]
        %v259 = vld [vmem:[%s197 + $0x88] sm:$0xff]
        %v260 = vld [vmem:[%s197 + $0x90] sm:$0xff]
        %v261 = vld [vmem:[%s197 + $0x98] sm:$0xff]
        %v262 = vld [vmem:[%s197 + $0xa0] sm:$0xff]
        %v263 = vld [vmem:[%s197 + $0xa8] sm:$0xff]
        %v264 = vld [vmem:[%s197 + $0xb0] sm:$0xff]
        %v265 = vld [vmem:[%s197 + $0xb8] sm:$0xff]
        %v266 = vld [vmem:[%s197 + $0xc0] sm:$0xff]
        %v267 = vld [vmem:[%s197 + $0xc8] sm:$0xff]
        %v268 = vld [vmem:[%s197 + $0xd0] sm:$0xff]
        %v269 = vld [vmem:[%s197 + $0xd8] sm:$0xff]
        %v270 = vld [vmem:[%s197 + $0xe0] sm:$0xff]
        %v271 = vld [vmem:[%s197 + $0xe8] sm:$0xff]
        %v272 = vld [vmem:[%s197 + $0xf0] sm:$0xff]
        %v273 = vld [vmem:[%s197 + $0xf8] sm:$0xff]
        %v274 = vld [vmem:[%s197 + $0x100] sm:$0xff]
        %v275 = vld [vmem:[%s197 + $0x108] sm:$0xff]
        %v276 = vld [vmem:[%s197 + $0x110] sm:$0xff]
        %v277 = vld [vmem:[%s197 + $0x118] sm:$0xff]
        %v278 = vld [vmem:[%s197 + $0x120] sm:$0xff]
        %v279 = vld [vmem:[%s197 + $0x128] sm:$0xff]
        %v280 = vld [vmem:[%s197 + $0x130] sm:$0xff]
        %v281 = vld [vmem:[%s197 + $0x138] sm:$0xff]
        %v282 = vld [vmem:[%s197 + $0x140] sm:$0xff]
        %v283 = vld [vmem:[%s197 + $0x148] sm:$0xff]
        %v284 = vld [vmem:[%s197 + $0x150] sm:$0xff]
        %v285 = vld [vmem:[%s197 + $0x158] sm:$0xff]
        %v286 = vld [vmem:[%s197 + $0x160] sm:$0xff]
        %v287 = vld [vmem:[%s197 + $0x168] sm:$0xff]
        %v288 = vld [vmem:[%s197 + $0x170] sm:$0xff]
        %v289 = vld [vmem:[%s197 + $0x178] sm:$0xff]
        %v290 = vld [vmem:[%s197 + $0x180] sm:$0xff]
        %v291 = vld [vmem:[%s197 + $0x188] sm:$0xff]
        %v292 = vld [vmem:[%s197 + $0x190] sm:$0xff]
        %v293 = vld [vmem:[%s197 + $0x198] sm:$0xff]
        %v294 = vld [vmem:[%s197 + $0x1a0] sm:$0xff]
        %v295 = vld [vmem:[%s197 + $0x1a8] sm:$0xff]
        %v296 = vld [vmem:[%s197 + $0x1b0] sm:$0xff]
        %v297 = vld [vmem:[%s197 + $0x1b8] sm:$0xff]
        %v298 = vld [vmem:[%s197 + $0x1c0] sm:$0xff]
        %v299 = vld [vmem:[%s197 + $0x1c8] sm:$0xff]
        %v300 = vld [vmem:[%s197 + $0x1d0] sm:$0xff]
        %v301 = vld [vmem:[%s197 + $0x1d8] sm:$0xff]
        %v302 = vld [vmem:[%s197 + $0x1e0] sm:$0xff]
        %v303 = vld [vmem:[%s197 + $0x1e8] sm:$0xff]
        %v304 = vld [vmem:[%s197 + $0x1f0] sm:$0xff]
        %v305 = vld [vmem:[%s197 + $0x1f8] sm:$0xff]
        %v306 = vld [vmem:[%s197 + $0x200] sm:$0xff]
        %v307 = vld [vmem:[%s197 + $0x208] sm:$0xff]
        %v308 = vld [vmem:[%s197 + $0x210] sm:$0xff]
        %v309 = vld [vmem:[%s197 + $0x218] sm:$0xff]
        %v310 = vld [vmem:[%s197 + $0x220] sm:$0xff]
        %v311 = vld [vmem:[%s197 + $0x228] sm:$0xff]
        %v312 = vld [vmem:[%s197 + $0x230] sm:$0xff]
        %v313 = vld [vmem:[%s197 + $0x238] sm:$0xff]
        %v314 = vld [vmem:[%s197 + $0x240] sm:$0xff]
        %v315 = vld [vmem:[%s197 + $0x248] sm:$0xff]
        %v316 = vld [vmem:[%s197 + $0x250] sm:$0xff]
        %v317 = vld [vmem:[%s197 + $0x258] sm:$0xff]
        %v318 = vld [vmem:[%s197 + $0x260] sm:$0xff]
        %v319 = vld [vmem:[%s197 + $0x268] sm:$0xff]
        %v320 = vld [vmem:[%s197 + $0x270] sm:$0xff]
        %v321 = vld [vmem:[%s197 + $0x278] sm:$0xff]
        %v322 = vld [vmem:[%s197 + $0x280] sm:$0xff]
        %v323 = vld [vmem:[%s197 + $0x288] sm:$0xff]
        %v324 = vld [vmem:[%s197 + $0x290] sm:$0xff]
        %v325 = vld [vmem:[%s197 + $0x298] sm:$0xff]
        %v326 = vld [vmem:[%s197 + $0x2a0] sm:$0xff]
        %v327 = vld [vmem:[%s197 + $0x2a8] sm:$0xff]
        %v328 = vld [vmem:[%s197 + $0x2b0] sm:$0xff]
        %v329 = vld [vmem:[%s197 + $0x2b8] sm:$0xff]
        %v330 = vld [vmem:[%s197 + $0x2c0] sm:$0xff]
        %v331 = vld [vmem:[%s197 + $0x2c8] sm:$0xff]
        %v332 = vld [vmem:[%s197 + $0x2d0] sm:$0xff]
        %v333 = vld [vmem:[%s197 + $0x2d8] sm:$0xff]
        %v334 = vld [vmem:[%s197 + $0x2e0] sm:$0xff]
        %v335 = vld [vmem:[%s197 + $0x2e8] sm:$0xff]
        %v336 = vld [vmem:[%s197 + $0x2f0] sm:$0xff]
        %v337 = vld [vmem:[%s197 + $0x2f8] sm:$0xff]
        %v338 = vld [vmem:[%s197 + $0x300] sm:$0xff]
        %v339 = vld [vmem:[%s197 + $0x308] sm:$0xff]
        %v340 = vld [vmem:[%s197 + $0x310] sm:$0xff]
        %v341 = vld [vmem:[%s197 + $0x318] sm:$0xff]
        %v342 = vld [vmem:[%s197 + $0x320] sm:$0xff]
        %v343 = vld [vmem:[%s197 + $0x328] sm:$0xff]
        %v344 = vld [vmem:[%s197 + $0x330] sm:$0xff]
        %v345 = vld [vmem:[%s197 + $0x338] sm:$0xff]
        %v346 = vld [vmem:[%s197 + $0x340] sm:$0xff]
        %v347 = vld [vmem:[%s197 + $0x348] sm:$0xff]
        %v348 = vld [vmem:[%s197 + $0x350] sm:$0xff]
        %v349 = vld [vmem:[%s197 + $0x358] sm:$0xff]
        %v350 = vld [vmem:[%s197 + $0x360] sm:$0xff]
        %v351 = vld [vmem:[%s197 + $0x368] sm:$0xff]
        %v352 = vld [vmem:[%s197 + $0x370] sm:$0xff]
        %v353 = vld [vmem:[%s197 + $0x378] sm:$0xff]
        %v354 = vld [vmem:[%s197 + $0x380] sm:$0xff]
        %v355 = vld [vmem:[%s197 + $0x388] sm:$0xff]
        %v356 = vld [vmem:[%s197 + $0x390] sm:$0xff]
        %v357 = vld [vmem:[%s197 + $0x398] sm:$0xff]
        %v358 = vld [vmem:[%s197 + $0x3a0] sm:$0xff]
        %v359 = vld [vmem:[%s197 + $0x3a8] sm:$0xff]
        %v360 = vld [vmem:[%s197 + $0x3b0] sm:$0xff]
        %v361 = vld [vmem:[#allocation5] sm:$0xff]
        %v362 = vld [vmem:[#allocation5 + $0x8] sm:$0xff]
        %v363 = vld [vmem:[#allocation5 + $0x10] sm:$0xff]
        %v364 = vld [vmem:[#allocation5 + $0x18] sm:$0xff]
        %v365 = vld [vmem:[#allocation5 + $0x20] sm:$0xff]
        %v366 = vld [vmem:[#allocation5 + $0x28] sm:$0xff]
        %v367 = vld [vmem:[#allocation5 + $0x30] sm:$0xff]
        %v368 = vld [vmem:[#allocation5 + $0x38] sm:$0xff]
        %v369 = vld [vmem:[#allocation5 + $0x40] sm:$0xff]
        %v370 = vld [vmem:[#allocation5 + $0x48] sm:$0xff]
        %v371 = vld [vmem:[#allocation5 + $0x50] sm:$0xff]
        %v372 = vld [vmem:[#allocation5 + $0x58] sm:$0xff]
        %v373 = vld [vmem:[#allocation5 + $0x60] sm:$0xff]
        %v374 = vld [vmem:[#allocation5 + $0x68] sm:$0xff]
        %v375 = vld [vmem:[#allocation5 + $0x70] sm:$0xff]
        %v376 = vld [vmem:[#allocation5 + $0x78] sm:$0xff]
        %v377 = vld [vmem:[#allocation5 + $0x80] sm:$0xff]
        %v378 = vld [vmem:[#allocation5 + $0x88] sm:$0xff]
        %v379 = vld [vmem:[#allocation5 + $0x90] sm:$0xff]
        %v380 = vld [vmem:[#allocation5 + $0x98] sm:$0xff]
        %v381 = vld [vmem:[#allocation5 + $0xa0] sm:$0xff]
        %v382 = vld [vmem:[#allocation5 + $0xa8] sm:$0xff]
        %v383 = vld [vmem:[#allocation5 + $0xb0] sm:$0xff]
        %v384 = vld [vmem:[#allocation5 + $0xb8] sm:$0xff]
        %v385 = vld [vmem:[#allocation5 + $0xc0] sm:$0xff]
        %v386 = vld [vmem:[#allocation5 + $0xc8] sm:$0xff]
        %v387 = vld [vmem:[#allocation5 + $0xd0] sm:$0xff]
        %v388 = vld [vmem:[#allocation5 + $0xd8] sm:$0xff]
        %v389 = vld [vmem:[#allocation5 + $0xe0] sm:$0xff]
        %v390 = vld [vmem:[#allocation5 + $0xe8] sm:$0xff]
        %v391 = vld [vmem:[#allocation5 + $0xf0] sm:$0xff]
        %v392 = vld [vmem:[#allocation5 + $0xf8] sm:$0xff]
        %v393 = vld [vmem:[#allocation5 + $0x100] sm:$0xff]
        %v394 = vld [vmem:[#allocation5 + $0x108] sm:$0xff]
        %v395 = vld [vmem:[#allocation5 + $0x110] sm:$0xff]
        %v396 = vld [vmem:[#allocation5 + $0x118] sm:$0xff]
        %v397 = vld [vmem:[#allocation5 + $0x120] sm:$0xff]
        %v398 = vld [vmem:[#allocation5 + $0x128] sm:$0xff]
        %v399 = vld [vmem:[#allocation5 + $0x130] sm:$0xff]
        %v400 = vld [vmem:[#allocation5 + $0x138] sm:$0xff]
        %v401 = vld [vmem:[#allocation5 + $0x140] sm:$0xff]
        %v402 = vld [vmem:[#allocation5 + $0x148] sm:$0xff]
        %v403 = vld [vmem:[#allocation5 + $0x150] sm:$0xff]
        %v404 = vld [vmem:[#allocation5 + $0x158] sm:$0xff]
        %v405 = vld [vmem:[#allocation5 + $0x160] sm:$0xff]
        %v406 = vld [vmem:[#allocation5 + $0x168] sm:$0xff]
        %v407 = vld [vmem:[#allocation5 + $0x170] sm:$0xff]
        %v408 = vld [vmem:[#allocation5 + $0x178] sm:$0xff]
        %v409 = vld [vmem:[#allocation5 + $0x180] sm:$0xff]
        %v410 = vld [vmem:[#allocation5 + $0x188] sm:$0xff]
        %v411 = vld [vmem:[#allocation5 + $0x190] sm:$0xff]
        %v412 = vld [vmem:[#allocation5 + $0x198] sm:$0xff]
        %v413 = vld [vmem:[#allocation5 + $0x1a0] sm:$0xff]
        %v414 = vld [vmem:[#allocation5 + $0x1a8] sm:$0xff]
        %v415 = vld [vmem:[#allocation5 + $0x1b0] sm:$0xff]
        %v416 = vld [vmem:[#allocation5 + $0x1b8] sm:$0xff]
        %v417 = vld [vmem:[#allocation5 + $0x1c0] sm:$0xff]
        %v418 = vld [vmem:[#allocation5 + $0x1c8] sm:$0xff]
        %v419 = vld [vmem:[#allocation5 + $0x1d0] sm:$0xff]
        %v420 = vld [vmem:[#allocation5 + $0x1d8] sm:$0xff]
        %v421 = vld [vmem:[#allocation5 + $0x1e0] sm:$0xff]
        %v422 = vld [vmem:[#allocation5 + $0x1e8] sm:$0xff]
        %v423 = vld [vmem:[#allocation5 + $0x1f0] sm:$0xff]
        %v424 = vld [vmem:[#allocation5 + $0x1f8] sm:$0xff]
        %v425 = vld [vmem:[#allocation5 + $0x200] sm:$0xff]
        %v426 = vld [vmem:[#allocation5 + $0x208] sm:$0xff]
        %v427 = vld [vmem:[#allocation5 + $0x210] sm:$0xff]
        %v428 = vld [vmem:[#allocation5 + $0x218] sm:$0xff]
        %v429 = vld [vmem:[#allocation5 + $0x220] sm:$0xff]
        %v430 = vld [vmem:[#allocation5 + $0x228] sm:$0xff]
        %v431 = vld [vmem:[#allocation5 + $0x230] sm:$0xff]
        %v432 = vld [vmem:[#allocation5 + $0x238] sm:$0xff]
        %v433 = vld [vmem:[#allocation5 + $0x240] sm:$0xff]
        %v434 = vld [vmem:[#allocation5 + $0x248] sm:$0xff]
        %v435 = vld [vmem:[#allocation5 + $0x250] sm:$0xff]
        %v436 = vld [vmem:[#allocation5 + $0x258] sm:$0xff]
        %v437 = vld [vmem:[#allocation5 + $0x260] sm:$0xff]
        %v438 = vld [vmem:[#allocation5 + $0x268] sm:$0xff]
        %v439 = vld [vmem:[#allocation5 + $0x270] sm:$0xff]
        %v440 = vld [vmem:[#allocation5 + $0x278] sm:$0xff]
        %v441 = vld [vmem:[#allocation5 + $0x280] sm:$0xff]
        %v442 = vld [vmem:[#allocation5 + $0x288] sm:$0xff]
        %v443 = vld [vmem:[#allocation5 + $0x290] sm:$0xff]
        %v444 = vld [vmem:[#allocation5 + $0x298] sm:$0xff]
        %v445 = vld [vmem:[#allocation5 + $0x2a0] sm:$0xff]
        %v446 = vld [vmem:[#allocation5 + $0x2a8] sm:$0xff]
        %v447 = vld [vmem:[#allocation5 + $0x2b0] sm:$0xff]
        %v448 = vld [vmem:[#allocation5 + $0x2b8] sm:$0xff]
        %v449 = vld [vmem:[#allocation5 + $0x2c0] sm:$0xff]
        %v450 = vld [vmem:[#allocation5 + $0x2c8] sm:$0xff]
        %v451 = vld [vmem:[#allocation5 + $0x2d0] sm:$0xff]
        %v452 = vld [vmem:[#allocation5 + $0x2d8] sm:$0xff]
        %v453 = vld [vmem:[#allocation5 + $0x2e0] sm:$0xff]
        %v454 = vld [vmem:[#allocation5 + $0x2e8] sm:$0xff]
        %v455 = vld [vmem:[#allocation5 + $0x2f0] sm:$0xff]
        %v456 = vld [vmem:[#allocation5 + $0x2f8] sm:$0xff]
        %v457 = vld [vmem:[#allocation5 + $0x300] sm:$0xff]
        %v458 = vld [vmem:[#allocation5 + $0x308] sm:$0xff]
        %v459 = vld [vmem:[#allocation7] sm:$0x1]
        %v461 = vperm.slane %v459, 0
        %vm463 = vcmask 130048
        %v465 = vsel %vm463, %v248, 0
        %v468 = vsel %vm463, %v255, 0
        %v471 = vsel %vm463, %v262, 0
        %v474 = vsel %vm463, %v269, 0
        %v477 = vsel %vm463, %v276, 0
        %v480 = vsel %vm463, %v283, 0
        %v483 = vsel %vm463, %v290, 0
        %v486 = vsel %vm463, %v297, 0
        %v489 = vsel %vm463, %v304, 0
        %v492 = vsel %vm463, %v311, 0
        %v495 = vsel %vm463, %v318, 0
        %v498 = vsel %vm463, %v325, 0
        %v501 = vsel %vm463, %v332, 0
        %v504 = vsel %vm463, %v339, 0
        %v507 = vsel %vm463, %v346, 0
        %v510 = vsel %vm463, %v353, 0
        %v513 = vsel %vm463, %v360, 0
        %515 = vmatpush.msra.mxu0 %v376
        %516 = vmatpush.msra.mxu0 %v375
        %517 = vmatpush.msra.mxu0 %v374
        %518 = vmatpush.msra.mxu0 %v373
        %519 = vmatpush.msra.mxu0 %v372
        %520 = vmatpush.msra.mxu0 %v371
        %521 = vmatpush.msra.mxu0 %v370
        %522 = vmatpush.msra.mxu0 %v369
        %523 = vmatpush.msra.mxu0 %v368
        %524 = vmatpush.msra.mxu0 %v367
        %525 = vmatpush.msra.mxu0 %v366
        %526 = vmatpush.msra.mxu0 %v365
        %527 = vmatpush.msra.mxu0 %v364
        %528 = vmatpush.msra.mxu0 %v363
        %529 = vmatpush.msra.mxu0 %v362
        %530 = vmatpush.msra.mxu0 %v361
        %531 = vmatmul.f32.gmra.mxu0 %v242
        %v532 = vpop.f32.mrf.mxu0
        %v533 = vadd.f32 %v461, %v532
        %534 = vmatmul.f32.gmra.mxu0 %v249
        %v535 = vpop.f32.mrf.mxu0
        %v536 = vadd.f32 %v461, %v535
        %537 = vmatmul.f32.gmra.mxu0 %v256
        %v538 = vpop.f32.mrf.mxu0
        %v539 = vadd.f32 %v461, %v538
        %540 = vmatmul.f32.gmra.mxu0 %v263
        %v541 = vpop.f32.mrf.mxu0
        %v542 = vadd.f32 %v461, %v541
        %543 = vmatmul.f32.gmra.mxu0 %v270
        %v544 = vpop.f32.mrf.mxu0
        %v545 = vadd.f32 %v461, %v544
        %546 = vmatmul.f32.gmra.mxu0 %v277
        %v547 = vpop.f32.mrf.mxu0
        %v548 = vadd.f32 %v461, %v547
        %549 = vmatmul.f32.gmra.mxu0 %v284
        %v550 = vpop.f32.mrf.mxu0
        %v551 = vadd.f32 %v461, %v550
        %552 = vmatmul.f32.gmra.mxu0 %v291
        %v553 = vpop.f32.mrf.mxu0
        %v554 = vadd.f32 %v461, %v553
        %555 = vmatmul.f32.gmra.mxu0 %v298
        %v556 = vpop.f32.mrf.mxu0
        %v557 = vadd.f32 %v461, %v556
        %558 = vmatmul.f32.gmra.mxu0 %v305
        %v559 = vpop.f32.mrf.mxu0
        %v560 = vadd.f32 %v461, %v559
        %561 = vmatmul.f32.gmra.mxu0 %v312
        %v562 = vpop.f32.mrf.mxu0
        %v563 = vadd.f32 %v461, %v562
        %564 = vmatmul.f32.gmra.mxu0 %v319
        %v565 = vpop.f32.mrf.mxu0
        %v566 = vadd.f32 %v461, %v565
        %567 = vmatmul.f32.gmra.mxu0 %v326
        %v568 = vpop.f32.mrf.mxu0
        %v569 = vadd.f32 %v461, %v568
        %570 = vmatmul.f32.gmra.mxu0 %v333
        %v571 = vpop.f32.mrf.mxu0
        %v572 = vadd.f32 %v461, %v571
        %573 = vmatmul.f32.gmra.mxu0 %v340
        %v574 = vpop.f32.mrf.mxu0
        %v575 = vadd.f32 %v461, %v574
        %576 = vmatmul.f32.gmra.mxu0 %v347
        %v577 = vpop.f32.mrf.mxu0
        %v578 = vadd.f32 %v461, %v577
        %579 = vmatmul.f32.gmra.mxu0 %v354
        %v580 = vpop.f32.mrf.mxu0
        %v581 = vadd.f32 %v461, %v580
        %582 = vdwg.mxu0
        %583 = vmatpush.msra.mxu0 %v392
        %584 = vmatpush.msra.mxu0 %v391
        %585 = vmatpush.msra.mxu0 %v390
        %586 = vmatpush.msra.mxu0 %v389
        %587 = vmatpush.msra.mxu0 %v388
        %588 = vmatpush.msra.mxu0 %v387
        %589 = vmatpush.msra.mxu0 %v386
        %590 = vmatpush.msra.mxu0 %v385
        %591 = vmatpush.msra.mxu0 %v384
        %592 = vmatpush.msra.mxu0 %v383
        %593 = vmatpush.msra.mxu0 %v382
        %594 = vmatpush.msra.mxu0 %v381
        %595 = vmatpush.msra.mxu0 %v380
        %596 = vmatpush.msra.mxu0 %v379
        %597 = vmatpush.msra.mxu0 %v378
        %598 = vmatpush.msra.mxu0 %v377
        %599 = vmatmul.f32.gmra.mxu0 %v243
        %v600 = vpop.f32.mrf.mxu0
        %v601 = vadd.f32 %v533, %v600
        %602 = vmatmul.f32.gmra.mxu0 %v250
        %v603 = vpop.f32.mrf.mxu0
        %v604 = vadd.f32 %v536, %v603
        %605 = vmatmul.f32.gmra.mxu0 %v257
        %v606 = vpop.f32.mrf.mxu0
        %v607 = vadd.f32 %v539, %v606
        %608 = vmatmul.f32.gmra.mxu0 %v264
        %v609 = vpop.f32.mrf.mxu0
        %v610 = vadd.f32 %v542, %v609
        %611 = vmatmul.f32.gmra.mxu0 %v271
        %v612 = vpop.f32.mrf.mxu0
        %v613 = vadd.f32 %v545, %v612
        %614 = vmatmul.f32.gmra.mxu0 %v278
        %v615 = vpop.f32.mrf.mxu0
        %v616 = vadd.f32 %v548, %v615
        %617 = vmatmul.f32.gmra.mxu0 %v285
        %v618 = vpop.f32.mrf.mxu0
        %v619 = vadd.f32 %v551, %v618
        %620 = vmatmul.f32.gmra.mxu0 %v292
        %v621 = vpop.f32.mrf.mxu0
        %v622 = vadd.f32 %v554, %v621
        %623 = vmatmul.f32.gmra.mxu0 %v299
        %v624 = vpop.f32.mrf.mxu0
        %v625 = vadd.f32 %v557, %v624
        %626 = vmatmul.f32.gmra.mxu0 %v306
        %v627 = vpop.f32.mrf.mxu0
        %v628 = vadd.f32 %v560, %v627
        %629 = vmatmul.f32.gmra.mxu0 %v313
        %v630 = vpop.f32.mrf.mxu0
        %v631 = vadd.f32 %v563, %v630
        %632 = vmatmul.f32.gmra.mxu0 %v320
        %v633 = vpop.f32.mrf.mxu0
        %v634 = vadd.f32 %v566, %v633
        %635 = vmatmul.f32.gmra.mxu0 %v327
        %v636 = vpop.f32.mrf.mxu0
        %v637 = vadd.f32 %v569, %v636
        %638 = vmatmul.f32.gmra.mxu0 %v334
        %v639 = vpop.f32.mrf.mxu0
        %v640 = vadd.f32 %v572, %v639
        %641 = vmatmul.f32.gmra.mxu0 %v341
        %v642 = vpop.f32.mrf.mxu0
        %v643 = vadd.f32 %v575, %v642
        %644 = vmatmul.f32.gmra.mxu0 %v348
        %v645 = vpop.f32.mrf.mxu0
        %v646 = vadd.f32 %v578, %v645
        %647 = vmatmul.f32.gmra.mxu0 %v355
        %v648 = vpop.f32.mrf.mxu0
        %v649 = vadd.f32 %v581, %v648
        %650 = vdwg.mxu0
        %651 = vmatpush.msra.mxu0 %v408
        %652 = vmatpush.msra.mxu0 %v407
        %653 = vmatpush.msra.mxu0 %v406
        %654 = vmatpush.msra.mxu0 %v405
        %655 = vmatpush.msra.mxu0 %v404
        %656 = vmatpush.msra.mxu0 %v403
        %657 = vmatpush.msra.mxu0 %v402
        %658 = vmatpush.msra.mxu0 %v401
        %659 = vmatpush.msra.mxu0 %v400
        %660 = vmatpush.msra.mxu0 %v399
        %661 = vmatpush.msra.mxu0 %v398
        %662 = vmatpush.msra.mxu0 %v397
        %663 = vmatpush.msra.mxu0 %v396
        %664 = vmatpush.msra.mxu0 %v395
        %665 = vmatpush.msra.mxu0 %v394
        %666 = vmatpush.msra.mxu0 %v393
        %667 = vmatmul.f32.gmra.mxu0 %v244
        %v668 = vpop.f32.mrf.mxu0
        %v669 = vadd.f32 %v601, %v668
        %670 = vmatmul.f32.gmra.mxu0 %v251
        %v671 = vpop.f32.mrf.mxu0
        %v672 = vadd.f32 %v604, %v671
        %673 = vmatmul.f32.gmra.mxu0 %v258
        %v674 = vpop.f32.mrf.mxu0
        %v675 = vadd.f32 %v607, %v674
        %676 = vmatmul.f32.gmra.mxu0 %v265
        %v677 = vpop.f32.mrf.mxu0
        %v678 = vadd.f32 %v610, %v677
        %679 = vmatmul.f32.gmra.mxu0 %v272
        %v680 = vpop.f32.mrf.mxu0
        %v681 = vadd.f32 %v613, %v680
        %682 = vmatmul.f32.gmra.mxu0 %v279
        %v683 = vpop.f32.mrf.mxu0
        %v684 = vadd.f32 %v616, %v683
        %685 = vmatmul.f32.gmra.mxu0 %v286
        %v686 = vpop.f32.mrf.mxu0
        %v687 = vadd.f32 %v619, %v686
        %688 = vmatmul.f32.gmra.mxu0 %v293
        %v689 = vpop.f32.mrf.mxu0
        %v690 = vadd.f32 %v622, %v689
        %691 = vmatmul.f32.gmra.mxu0 %v300
        %v692 = vpop.f32.mrf.mxu0
        %v693 = vadd.f32 %v625, %v692
        %694 = vmatmul.f32.gmra.mxu0 %v307
        %v695 = vpop.f32.mrf.mxu0
        %v696 = vadd.f32 %v628, %v695
        %697 = vmatmul.f32.gmra.mxu0 %v314
        %v698 = vpop.f32.mrf.mxu0
        %v699 = vadd.f32 %v631, %v698
        %700 = vmatmul.f32.gmra.mxu0 %v321
        %v701 = vpop.f32.mrf.mxu0
        %v702 = vadd.f32 %v634, %v701
        %703 = vmatmul.f32.gmra.mxu0 %v328
        %v704 = vpop.f32.mrf.mxu0
        %v705 = vadd.f32 %v637, %v704
        %706 = vmatmul.f32.gmra.mxu0 %v335
        %v707 = vpop.f32.mrf.mxu0
        %v708 = vadd.f32 %v640, %v707
        %709 = vmatmul.f32.gmra.mxu0 %v342
        %v710 = vpop.f32.mrf.mxu0
        %v711 = vadd.f32 %v643, %v710
        %712 = vmatmul.f32.gmra.mxu0 %v349
        %v713 = vpop.f32.mrf.mxu0
        %v714 = vadd.f32 %v646, %v713
        %715 = vmatmul.f32.gmra.mxu0 %v356
        %v716 = vpop.f32.mrf.mxu0
        %v717 = vadd.f32 %v649, %v716
        %718 = vdwg.mxu0
        %719 = vmatpush.msra.mxu0 %v424
        %720 = vmatpush.msra.mxu0 %v423
        %721 = vmatpush.msra.mxu0 %v422
        %722 = vmatpush.msra.mxu0 %v421
        %723 = vmatpush.msra.mxu0 %v420
        %724 = vmatpush.msra.mxu0 %v419
        %725 = vmatpush.msra.mxu0 %v418
        %726 = vmatpush.msra.mxu0 %v417
        %727 = vmatpush.msra.mxu0 %v416
        %728 = vmatpush.msra.mxu0 %v415
        %729 = vmatpush.msra.mxu0 %v414
        %730 = vmatpush.msra.mxu0 %v413
        %731 = vmatpush.msra.mxu0 %v412
        %732 = vmatpush.msra.mxu0 %v411
        %733 = vmatpush.msra.mxu0 %v410
        %734 = vmatpush.msra.mxu0 %v409
        %735 = vmatmul.f32.gmra.mxu0 %v245
        %v736 = vpop.f32.mrf.mxu0
        %v737 = vadd.f32 %v669, %v736
        %738 = vmatmul.f32.gmra.mxu0 %v252
        %v739 = vpop.f32.mrf.mxu0
        %v740 = vadd.f32 %v672, %v739
        %741 = vmatmul.f32.gmra.mxu0 %v259
        %v742 = vpop.f32.mrf.mxu0
        %v743 = vadd.f32 %v675, %v742
        %744 = vmatmul.f32.gmra.mxu0 %v266
        %v745 = vpop.f32.mrf.mxu0
        %v746 = vadd.f32 %v678, %v745
        %747 = vmatmul.f32.gmra.mxu0 %v273
        %v748 = vpop.f32.mrf.mxu0
        %v749 = vadd.f32 %v681, %v748
        %750 = vmatmul.f32.gmra.mxu0 %v280
        %v751 = vpop.f32.mrf.mxu0
        %v752 = vadd.f32 %v684, %v751
        %753 = vmatmul.f32.gmra.mxu0 %v287
        %v754 = vpop.f32.mrf.mxu0
        %v755 = vadd.f32 %v687, %v754
        %756 = vmatmul.f32.gmra.mxu0 %v294
        %v757 = vpop.f32.mrf.mxu0
        %v758 = vadd.f32 %v690, %v757
        %759 = vmatmul.f32.gmra.mxu0 %v301
        %v760 = vpop.f32.mrf.mxu0
        %v761 = vadd.f32 %v693, %v760
        %762 = vmatmul.f32.gmra.mxu0 %v308
        %v763 = vpop.f32.mrf.mxu0
        %v764 = vadd.f32 %v696, %v763
        %765 = vmatmul.f32.gmra.mxu0 %v315
        %v766 = vpop.f32.mrf.mxu0
        %v767 = vadd.f32 %v699, %v766
        %768 = vmatmul.f32.gmra.mxu0 %v322
        %v769 = vpop.f32.mrf.mxu0
        %v770 = vadd.f32 %v702, %v769
        %771 = vmatmul.f32.gmra.mxu0 %v329
        %v772 = vpop.f32.mrf.mxu0
        %v773 = vadd.f32 %v705, %v772
        %774 = vmatmul.f32.gmra.mxu0 %v336
        %v775 = vpop.f32.mrf.mxu0
        %v776 = vadd.f32 %v708, %v775
        %777 = vmatmul.f32.gmra.mxu0 %v343
        %v778 = vpop.f32.mrf.mxu0
        %v779 = vadd.f32 %v711, %v778
        %780 = vmatmul.f32.gmra.mxu0 %v350
        %v781 = vpop.f32.mrf.mxu0
        %v782 = vadd.f32 %v714, %v781
        %783 = vmatmul.f32.gmra.mxu0 %v357
        %v784 = vpop.f32.mrf.mxu0
        %v785 = vadd.f32 %v717, %v784
        %786 = vdwg.mxu0
        %787 = vmatpush.msra.mxu0 %v440
        %788 = vmatpush.msra.mxu0 %v439
        %789 = vmatpush.msra.mxu0 %v438
        %790 = vmatpush.msra.mxu0 %v437
        %791 = vmatpush.msra.mxu0 %v436
        %792 = vmatpush.msra.mxu0 %v435
        %793 = vmatpush.msra.mxu0 %v434
        %794 = vmatpush.msra.mxu0 %v433
        %795 = vmatpush.msra.mxu0 %v432
        %796 = vmatpush.msra.mxu0 %v431
        %797 = vmatpush.msra.mxu0 %v430
        %798 = vmatpush.msra.mxu0 %v429
        %799 = vmatpush.msra.mxu0 %v428
        %800 = vmatpush.msra.mxu0 %v427
        %801 = vmatpush.msra.mxu0 %v426
        %802 = vmatpush.msra.mxu0 %v425
        %803 = vmatmul.f32.gmra.mxu0 %v246
        %v804 = vpop.f32.mrf.mxu0
        %v805 = vadd.f32 %v737, %v804
        %806 = vmatmul.f32.gmra.mxu0 %v253
        %v807 = vpop.f32.mrf.mxu0
        %v808 = vadd.f32 %v740, %v807
        %809 = vmatmul.f32.gmra.mxu0 %v260
        %v810 = vpop.f32.mrf.mxu0
        %v811 = vadd.f32 %v743, %v810
        %812 = vmatmul.f32.gmra.mxu0 %v267
        %v813 = vpop.f32.mrf.mxu0
        %v814 = vadd.f32 %v746, %v813
        %815 = vmatmul.f32.gmra.mxu0 %v274
        %v816 = vpop.f32.mrf.mxu0
        %v817 = vadd.f32 %v749, %v816
        %818 = vmatmul.f32.gmra.mxu0 %v281
        %v819 = vpop.f32.mrf.mxu0
        %v820 = vadd.f32 %v752, %v819
        %821 = vmatmul.f32.gmra.mxu0 %v288
        %v822 = vpop.f32.mrf.mxu0
        %v823 = vadd.f32 %v755, %v822
        %824 = vmatmul.f32.gmra.mxu0 %v295
        %v825 = vpop.f32.mrf.mxu0
        %v826 = vadd.f32 %v758, %v825
        %827 = vmatmul.f32.gmra.mxu0 %v302
        %v828 = vpop.f32.mrf.mxu0
        %v829 = vadd.f32 %v761, %v828
        %830 = vmatmul.f32.gmra.mxu0 %v309
        %v831 = vpop.f32.mrf.mxu0
        %v832 = vadd.f32 %v764, %v831
        %833 = vmatmul.f32.gmra.mxu0 %v316
        %v834 = vpop.f32.mrf.mxu0
        %v835 = vadd.f32 %v767, %v834
        %836 = vmatmul.f32.gmra.mxu0 %v323
        %v837 = vpop.f32.mrf.mxu0
        %v838 = vadd.f32 %v770, %v837
        %839 = vmatmul.f32.gmra.mxu0 %v330
        %v840 = vpop.f32.mrf.mxu0
        %v841 = vadd.f32 %v773, %v840
        %842 = vmatmul.f32.gmra.mxu0 %v337
        %v843 = vpop.f32.mrf.mxu0
        %v844 = vadd.f32 %v776, %v843
        %845 = vmatmul.f32.gmra.mxu0 %v344
        %v846 = vpop.f32.mrf.mxu0
        %v847 = vadd.f32 %v779, %v846
        %848 = vmatmul.f32.gmra.mxu0 %v351
        %v849 = vpop.f32.mrf.mxu0
        %v850 = vadd.f32 %v782, %v849
        %851 = vmatmul.f32.gmra.mxu0 %v358
        %v852 = vpop.f32.mrf.mxu0
        %v853 = vadd.f32 %v785, %v852
        %854 = vdwg.mxu0
        %855 = vmatpush.msra.mxu0 %v456
        %856 = vmatpush.msra.mxu0 %v455
        %857 = vmatpush.msra.mxu0 %v454
        %858 = vmatpush.msra.mxu0 %v453
        %859 = vmatpush.msra.mxu0 %v452
        %860 = vmatpush.msra.mxu0 %v451
        %861 = vmatpush.msra.mxu0 %v450
        %862 = vmatpush.msra.mxu0 %v449
        %863 = vmatpush.msra.mxu0 %v448
        %864 = vmatpush.msra.mxu0 %v447
        %865 = vmatpush.msra.mxu0 %v446
        %866 = vmatpush.msra.mxu0 %v445
        %867 = vmatpush.msra.mxu0 %v444
        %868 = vmatpush.msra.mxu0 %v443
        %869 = vmatpush.msra.mxu0 %v442
        %870 = vmatpush.msra.mxu0 %v441
        %871 = vmatmul.f32.gmra.mxu0 %v247
        %v872 = vpop.f32.mrf.mxu0
        %v873 = vadd.f32 %v805, %v872
        %874 = vmatmul.f32.gmra.mxu0 %v254
        %v875 = vpop.f32.mrf.mxu0
        %v876 = vadd.f32 %v808, %v875
        %877 = vmatmul.f32.gmra.mxu0 %v261
        %v878 = vpop.f32.mrf.mxu0
        %v879 = vadd.f32 %v811, %v878
        %880 = vmatmul.f32.gmra.mxu0 %v268
        %v881 = vpop.f32.mrf.mxu0
        %v882 = vadd.f32 %v814, %v881
        %883 = vmatmul.f32.gmra.mxu0 %v275
        %v884 = vpop.f32.mrf.mxu0
        %v885 = vadd.f32 %v817, %v884
        %886 = vmatmul.f32.gmra.mxu0 %v282
        %v887 = vpop.f32.mrf.mxu0
        %v888 = vadd.f32 %v820, %v887
        %889 = vmatmul.f32.gmra.mxu0 %v289
        %v890 = vpop.f32.mrf.mxu0
        %v891 = vadd.f32 %v823, %v890
        %892 = vmatmul.f32.gmra.mxu0 %v296
        %v893 = vpop.f32.mrf.mxu0
        %v894 = vadd.f32 %v826, %v893
        %895 = vmatmul.f32.gmra.mxu0 %v303
        %v896 = vpop.f32.mrf.mxu0
        %v897 = vadd.f32 %v829, %v896
        %898 = vmatmul.f32.gmra.mxu0 %v310
        %v899 = vpop.f32.mrf.mxu0
        %v900 = vadd.f32 %v832, %v899
        %901 = vmatmul.f32.gmra.mxu0 %v317
        %v902 = vpop.f32.mrf.mxu0
        %v903 = vadd.f32 %v835, %v902
        %904 = vmatmul.f32.gmra.mxu0 %v324
        %v905 = vpop.f32.mrf.mxu0
        %v906 = vadd.f32 %v838, %v905
        %907 = vmatmul.f32.gmra.mxu0 %v331
        %v908 = vpop.f32.mrf.mxu0
        %v909 = vadd.f32 %v841, %v908
        %910 = vmatmul.f32.gmra.mxu0 %v338
        %v911 = vpop.f32.mrf.mxu0
        %v912 = vadd.f32 %v844, %v911
        %913 = vmatmul.f32.gmra.mxu0 %v345
        %v914 = vpop.f32.mrf.mxu0
        %v915 = vadd.f32 %v847, %v914
        %916 = vmatmul.f32.gmra.mxu0 %v352
        %v917 = vpop.f32.mrf.mxu0
        %v918 = vadd.f32 %v850, %v917
        %919 = vmatmul.f32.gmra.mxu0 %v359
        %v920 = vpop.f32.mrf.mxu0
        %v921 = vadd.f32 %v853, %v920
        %922 = vdwg.mxu0
        %923 = vmatpush.msra.mxu0 0.0
        %924 = vmatpush.msra.mxu0 0.0
        %925 = vmatpush.msra.mxu0 0.0
        %926 = vmatpush.msra.mxu0 0.0
        %927 = vmatpush.msra.mxu0 0.0
        %928 = vmatpush.msra.mxu0 0.0
        %929 = vmatpush.msra.mxu0 0.0
        %930 = vmatpush.msra.mxu0 0.0
        %931 = vmatpush.msra.mxu0 0.0
        %932 = vmatpush.msra.mxu0 0.0
        %933 = vmatpush.msra.mxu0 0.0
        %934 = vmatpush.msra.mxu0 0.0
        %935 = vmatpush.msra.mxu0 0.0
        %936 = vmatpush.msra.mxu0 0.0
        %937 = vmatpush.msra.mxu0 %v458
        %938 = vmatpush.msra.mxu0 %v457
        %939 = vmatmul.f32.gmra.mxu0 %v465
        %v940 = vpop.f32.mrf.mxu0
        %v941 = vadd.f32 %v873, %v940
        %942 = vmatmul.f32.gmra.mxu0 %v468
        %v943 = vpop.f32.mrf.mxu0
        %v944 = vadd.f32 %v876, %v943
        %945 = vmatmul.f32.gmra.mxu0 %v471
        %v946 = vpop.f32.mrf.mxu0
        %v947 = vadd.f32 %v879, %v946
        %948 = vmatmul.f32.gmra.mxu0 %v474
        %v949 = vpop.f32.mrf.mxu0
        %v950 = vadd.f32 %v882, %v949
        %951 = vmatmul.f32.gmra.mxu0 %v477
        %v952 = vpop.f32.mrf.mxu0
        %v953 = vadd.f32 %v885, %v952
        %954 = vmatmul.f32.gmra.mxu0 %v480
        %v955 = vpop.f32.mrf.mxu0
        %v956 = vadd.f32 %v888, %v955
        %957 = vmatmul.f32.gmra.mxu0 %v483
        %v958 = vpop.f32.mrf.mxu0
        %v959 = vadd.f32 %v891, %v958
        %960 = vmatmul.f32.gmra.mxu0 %v486
        %v961 = vpop.f32.mrf.mxu0
        %v962 = vadd.f32 %v894, %v961
        %963 = vmatmul.f32.gmra.mxu0 %v489
        %v964 = vpop.f32.mrf.mxu0
        %v965 = vadd.f32 %v897, %v964
        %966 = vmatmul.f32.gmra.mxu0 %v492
        %v967 = vpop.f32.mrf.mxu0
        %v968 = vadd.f32 %v900, %v967
        %969 = vmatmul.f32.gmra.mxu0 %v495
        %v970 = vpop.f32.mrf.mxu0
        %v971 = vadd.f32 %v903, %v970
        %972 = vmatmul.f32.gmra.mxu0 %v498
        %v973 = vpop.f32.mrf.mxu0
        %v974 = vadd.f32 %v906, %v973
        %975 = vmatmul.f32.gmra.mxu0 %v501
        %v976 = vpop.f32.mrf.mxu0
        %v977 = vadd.f32 %v909, %v976
        %978 = vmatmul.f32.gmra.mxu0 %v504
        %v979 = vpop.f32.mrf.mxu0
        %v980 = vadd.f32 %v912, %v979
        %981 = vmatmul.f32.gmra.mxu0 %v507
        %v982 = vpop.f32.mrf.mxu0
        %v983 = vadd.f32 %v915, %v982
        %984 = vmatmul.f32.gmra.mxu0 %v510
        %v985 = vpop.f32.mrf.mxu0
        %v986 = vadd.f32 %v918, %v985
        %987 = vmatmul.f32.gmra.mxu0 %v513
        %v988 = vpop.f32.mrf.mxu0
        %v989 = vadd.f32 %v921, %v988
        %990 = vdwg.mxu0
        %991 = vst [vmem:[%s230] sm:$0xff] %v941
        %992 = vst [vmem:[%s230 + $0x8] sm:$0xff] %v944
        %993 = vst [vmem:[%s230 + $0x10] sm:$0xff] %v947
        %994 = vst [vmem:[%s230 + $0x18] sm:$0xff] %v950
        %995 = vst [vmem:[%s230 + $0x20] sm:$0xff] %v953
        %996 = vst [vmem:[%s230 + $0x28] sm:$0xff] %v956
        %997 = vst [vmem:[%s230 + $0x30] sm:$0xff] %v959
        %998 = vst [vmem:[%s230 + $0x38] sm:$0xff] %v962
        %999 = vst [vmem:[%s230 + $0x40] sm:$0xff] %v965
        %1000 = vst [vmem:[%s230 + $0x48] sm:$0xff] %v968
        %1001 = vst [vmem:[%s230 + $0x50] sm:$0xff] %v971
        %1002 = vst [vmem:[%s230 + $0x58] sm:$0xff] %v974
        %1003 = vst [vmem:[%s230 + $0x60] sm:$0xff] %v977
        %1004 = vst [vmem:[%s230 + $0x68] sm:$0xff] %v980
        %1005 = vst [vmem:[%s230 + $0x70] sm:$0xff] %v983
        %1006 = vst [vmem:[%s230 + $0x78] sm:$0xff] %v986
        %1007 = vst [vmem:[%s230 + $0x80] sm:$0xff] %v989
        %s1008 = sand.u32 %s97, 1
        %s1009 = scalar_lea.sflag [#allocation4], %s1008
        %s1010 = sand.u32 %s97, 1
        %s1011 = smul.addr %s1010, 136
        %s1012 = scalar_lea.vmem [#allocation8], %s1011
        // Predicated region
        $region45: #{tpu_custom_call.1} parent=31 // pred_check
          %p1013 = pneg %p107
        $region46: #{tpu_custom_call.1} parent=31 // pred_check_branch
          %1015 = sbr.rel (%p1013) target = $region48
        $region47: #{tpu_custom_call.1} parent=31 // pred_region
          %s1016 = smul.u32 17, %s21
          %s1017 = ssub.s32 65, %s1016
          %p1018 = scmp.lt.s32.totalorder %s1017, 17
          %s1019 = scalar_select %p1018, %s1017, 17
          %s1020 = smul.u32 8, %s1019
          %s1021 = ssub.s32 136, %s1020
          %s1022 = sshll.u32 %s1021, 4
          %1023 = vsyncadd %s1009, %s1022
          %p1024 = scmp.ne.s32.totalorder 0, %s1020
          %s1025 = smul.addr %s1016, 8
          %s1026 = scalar_lea.hbm %s3, %s1025
          %s1027 = smul.u32 8, %s1019
          %s1028 = sshll.u32 %s1012, 4
          %s1029 = int_to_ptr.vmem [resolvable:$true] %s1028
          %s1030 = sshll.u32 %s1026, 4
          %s1031 = int_to_ptr.hbm [resolvable:$true] %s1030
          %s1032 = sshll.u32 %s1027, 4
          %1036 = dma.vmem_to_hbm [thread:$0]  (%p1024), %s1029, %s1032, %s1031, %s1009, 128, 128, 8
        $region48: #{tpu_custom_call.1} parent=31 // pred_fallthru
          _
      $region32: #{tpu_custom_call.1} parent=5 // pred_fallthru
        _
      %p1037 = scmp.le.s32.totalorder 2, %s16
      // Predicated region
      $region49: #{tpu_custom_call.1} parent=5 // pred_check
        %p1038 = pneg %p1037
      $region50: #{tpu_custom_call.1} parent=5 // pred_check_branch
        %1040 = sbr.rel (%p1038) target = $region52
      $region51: #{tpu_custom_call.1} parent=5 // pred_region
        %s1041 = ssub.s32 %s16, 2
        // Predicated region
        $region53: #{tpu_custom_call.1} parent=51 // pred_check
          %p1042 = pneg %p113
        $region54: #{tpu_custom_call.1} parent=51 // pred_check_branch
          %1044 = sbr.rel (%p1042) target = $region56
        $region55: #{tpu_custom_call.1} parent=51 // pred_region
          %s1045 = sand.u32 %s98, 1
          %s1046 = scalar_lea.sflag [#allocation4], %s1045
          %s1047 = sand.u32 %s98, 1
          %s1048 = smul.addr %s1047, 136
          %s1049 = scalar_lea.vmem [#allocation8], %s1048
          %1051 = dma.done %s1046, 2176
        $region56: #{tpu_custom_call.1} parent=51 // pred_fallthru
          _
      $region52: #{tpu_custom_call.1} parent=5 // pred_fallthru
        _
    $region6: #{tpu_custom_call.1} parent=1 // loop_footer
      %s20 = sadd.s32 1, %s16
    $region7: #{tpu_custom_call.1} parent=1 // loop_footer_branch
      %15 = sbr.rel target = $region3
    $region8: #{tpu_custom_call.1} parent=1 // loop_exit
      _
    %1052 = vsyncpa [#allocation3], 1
    %s1053 = scalar_lea.sflag [#allocation3], 1
    %1054 = vsyncpa %s1053, 1
    %1055 = vsyncpa [#allocation6], 1
    %1056 = vsyncpa [#allocation4], 1
    %s1057 = scalar_lea.sflag [#allocation4], 1
    %1058 = vsyncpa %s1057, 1

</llo_original>
